<compile_context>
chip_gen: v5e
topology: v5e:2x2
jax: 0.10.0
libtpu: 0.0.40
codegen_flags: <defaults>
</compile_context>

<pallas_src>
import functools

import jax
import jax.numpy as jnp
from jax.experimental import pallas as pl
from jax.experimental.pallas import tpu as pltpu


def _ensemble_kernel(x_ref, wbb_ref, bbb_ref, wh_ref, bh_ref, o_ref, acc_ref):
    # x_ref   : (1, T_HW, C) one sample's spatial tile, channels-last (f32/bf16)
    # wbb_ref : (C, F)  backbone 1x1-conv weight (f32/bf16)
    # bbb_ref : (1, F)  backbone bias (f32)
    # wh_ref  : (F, Kp) averaged head weight, pooling-normalized, lane-padded (f32)
    # bh_ref  : (1, Kp) averaged head bias, lane-padded (f32)
    # o_ref   : (1, 1, Kp) per-sample output block (f32)
    # acc_ref : (1, F)  per-sample running spatial sum of backbone features (f32)
    s = pl.program_id(1)

    @pl.when(s == 0)
    def _init():
        acc_ref[...] = jnp.zeros_like(acc_ref)

    # Backbone: 1x1 conv == matmul over channels, bias, ReLU (all accum in f32).
    x2d = x_ref[0]                                              # (T_HW, C)
    h = jnp.dot(x2d, wbb_ref[...], preferred_element_type=jnp.float32)
    h = jnp.maximum(h + bbb_ref[...], 0.0)                      # (T_HW, F)

    # Global-average-pool numerator: spatial sum (1/HW is folded into wh).
    acc_ref[...] += jnp.sum(h, axis=0, keepdims=True)           # (1, F)

    @pl.when(s == pl.num_programs(1) - 1)
    def _finalize():
        # Single averaged head: (w1+w2+w3)/3/HW and (b1+b2+b3)/3 pre-folded.
        out = jnp.dot(acc_ref[...], wh_ref[...],
                      preferred_element_type=jnp.float32) + bh_ref[...]
        o_ref[...] = out[None].astype(o_ref.dtype)              # (1, 1, Kp)


def _round_up(v, m):
    return ((v + m - 1) // m) * m


def _pick_spatial_tile(hw, multiple, cap):
    """Largest divisor of `hw` that is a multiple of `multiple` and <= cap."""
    best = None
    t = multiple
    while t <= min(hw, cap):
        if hw % t == 0:
            best = t
        t += multiple
    return best if best is not None else hw  # full extent is always legal


@functools.partial(jax.jit, static_argnames=("input_dtype", "spatial_tile_cap"))
def average_ensemble_forward(x_nchw, params, *, input_dtype=jnp.float32,
                             spatial_tile_cap=1024):
    """x_nchw: (N, C, H, W) float32. Returns (N, K) float32."""
    N, C, H, W = x_nchw.shape
    HW = H * W
    wbb, bbb, w1, b1, w2, b2, w3, b3 = params
    F = wbb.shape[1]
    K = w1.shape[1]

    # --- host-side algebra: average the heads, fold in 1/HW pooling norm ---
    w_avg = (w1 + w2 + w3) * (1.0 / (3.0 * HW))
    b_avg = (b1 + b2 + b3) * (1.0 / 3.0)

    # Lane-dense output: pad head output dim up to a multiple of 128.
    Kp = _round_up(max(K, 128), 128)
    wh = jnp.zeros((F, Kp), jnp.float32).at[:, :K].set(w_avg.astype(jnp.float32))
    bh = jnp.zeros((1, Kp), jnp.float32).at[:, :K].set(b_avg.astype(jnp.float32))

    # NCHW -> (N, HW, C): channels-last so the 1x1 conv is a row-major matmul.
    x = jnp.transpose(x_nchw, (0, 2, 3, 1)).reshape(N, HW, C).astype(input_dtype)
    wbb_c = wbb.astype(input_dtype)
    bbb_c = bbb.astype(jnp.float32)

    # Spatial tile: divisor of HW, aligned to sublane packing (16 for bf16).
    sublane = 16 if input_dtype == jnp.bfloat16 else 8
    t_hw = _pick_spatial_tile(HW, sublane, spatial_tile_cap)
    n_spatial = HW // t_hw

    grid = (N, n_spatial)
    in_specs = [
        pl.BlockSpec((1, t_hw, C), lambda n, s: (n, s, 0)),   # x tile
        pl.BlockSpec((C, F),       lambda n, s: (0, 0)),      # backbone weight
        pl.BlockSpec((1, F),       lambda n, s: (0, 0)),      # backbone bias
        pl.BlockSpec((F, Kp),      lambda n, s: (0, 0)),      # averaged head W
        pl.BlockSpec((1, Kp),      lambda n, s: (0, 0)),      # averaged head b
    ]
    out_specs = pl.BlockSpec((1, 1, Kp), lambda n, s: (n, 0, 0))

    itemsize = jnp.dtype(input_dtype).itemsize
    cost = pl.CostEstimate(
        flops=2 * N * HW * C * F + 2 * N * F * Kp,
        transcendentals=0,
        bytes_accessed=(N * HW * C * itemsize + C * F * itemsize
                        + F * 4 + (F + 1) * Kp * 4 + N * Kp * 4),
    )

    out = pl.pallas_call(
        _ensemble_kernel,
        out_shape=jax.ShapeDtypeStruct((N, 1, Kp), jnp.float32),
        grid_spec=pltpu.PrefetchScalarGridSpec(
            num_scalar_prefetch=0,
            grid=grid,
            in_specs=in_specs,
            out_specs=out_specs,
            scratch_shapes=[pltpu.VMEM((1, F), jnp.float32)],
        ),
        compiler_params=pltpu.CompilerParams(
            dimension_semantics=("parallel", "arbitrary")),
        cost_estimate=cost,
    )(x, wbb_c, bbb_c, wh, bh)

    return out.reshape(N, Kp)[:, :K]


def _reference(x_nchw, params):
    """Pure-JAX reference matching the PyTorch module's f32 forward."""
    wbb, bbb, w1, b1, w2, b2, w3, b3 = params
    N, C, H, W = x_nchw.shape
    x = jnp.transpose(x_nchw, (0, 2, 3, 1)).reshape(N, H * W, C)
    h = jnp.maximum(jnp.einsum('npc,cf->npf', x, wbb) + bbb[None], 0.0)
    feat = jnp.mean(h, axis=1)
    o1 = feat @ w1 + b1
    o2 = feat @ w2 + b2
    o3 = feat @ w3 + b3
    return (o1 + o2 + o3) / 3.0


if __name__ == "__main__":
    # Small shapes consistent with the module's forward.
    N, C, H, W = 2, 4, 16, 16     # input image batch (NCHW)
    F = 32                        # backbone feature dim
    K = 8                         # number of classes per head

    key = jax.random.PRNGKey(0)
    keys = jax.random.split(key, 9)

    x = jax.random.normal(keys[0], (N, C, H, W), dtype=jnp.float32)

    wbb = jax.random.normal(keys[1], (C, F), dtype=jnp.float32) * 0.1
    bbb = jax.random.normal(keys[2], (1, F), dtype=jnp.float32) * 0.1
    w1 = jax.random.normal(keys[3], (F, K), dtype=jnp.float32) * 0.1
    b1 = jax.random.normal(keys[4], (1, K), dtype=jnp.float32) * 0.1
    w2 = jax.random.normal(keys[5], (F, K), dtype=jnp.float32) * 0.1
    b2 = jax.random.normal(keys[6], (1, K), dtype=jnp.float32) * 0.1
    w3 = jax.random.normal(keys[7], (F, K), dtype=jnp.float32) * 0.1
    b3 = jax.random.normal(keys[8], (1, K), dtype=jnp.float32) * 0.1

    params = (wbb, bbb, w1, b1, w2, b2, w3, b3)
    ref = _reference(x, params)

    # f32 path: exact parity with the (f32) PyTorch forward.  Small spatial
    # tile cap so the multi-step accumulation path is actually exercised.
    out = average_ensemble_forward(x, params, input_dtype=jnp.float32,
                                   spatial_tile_cap=128)
    out = jax.block_until_ready(out)
    assert out.shape == (N, K)
    assert jnp.allclose(out, ref, atol=1e-4, rtol=1e-4), "f32 mismatch vs reference"

    # bf16-input MXU path (v5e/v6e feedback): same structure, f32 accumulation
    # and f32 elementwise; only input rounding differs.
    out_bf16 = average_ensemble_forward(x, params, input_dtype=jnp.bfloat16,
                                        spatial_tile_cap=128)
    out_bf16 = jax.block_until_ready(out_bf16)
    assert out_bf16.shape == (N, K)
    assert jnp.allclose(out_bf16, ref, atol=5e-2, rtol=5e-2), "bf16 mismatch vs reference"

    print("KERNEL_OK")
</pallas_src>

<mosaic_0001>
module attributes {stable_mosaic.version = 11 : i64} {
  func.func @_ensemble_kernel(%arg0: i32, %arg1: i32, %arg2: memref<1x128x4xf32, #tpu.memory_space<vmem>>, %arg3: memref<4x32xf32, #tpu.memory_space<vmem>>, %arg4: memref<1x32xf32, #tpu.memory_space<vmem>>, %arg5: memref<32x128xf32, #tpu.memory_space<vmem>>, %arg6: memref<1x128xf32, #tpu.memory_space<vmem>>, %arg7: memref<1x1x128xf32, #tpu.memory_space<vmem>>, %arg8: memref<1x32xf32, #tpu.memory_space<vmem>>) attributes {dimension_semantics = [#tpu.dimension_semantics<parallel>, #tpu.dimension_semantics<arbitrary>], iteration_bounds = array<i64: 2, 2>, scalar_prefetch = 0 : i64, scratch_operands = 1 : i64, tpu.core_type = #tpu.core_type<tc>, window_params = [{transform_indices = @transform_0, window_bounds = array<i64: 1, 128, 4>}, {pipeline_mode = #tpu.pipeline_mode<synchronous>, transform_indices = @transform_1, window_bounds = array<i64: 4, 32>}, {pipeline_mode = #tpu.pipeline_mode<synchronous>, transform_indices = @transform_2, window_bounds = array<i64: 1, 32>}, {pipeline_mode = #tpu.pipeline_mode<synchronous>, transform_indices = @transform_3, window_bounds = array<i64: 32, 128>}, {pipeline_mode = #tpu.pipeline_mode<synchronous>, transform_indices = @transform_4, window_bounds = array<i64: 1, 128>}, {transform_indices = @transform_5, window_bounds = array<i64: 1, 1, 128>}]} {
    %c0_i32 = arith.constant 0 : i32
    %0 = arith.cmpi eq, %arg1, %c0_i32 : i32
    %1 = arith.extui %0 : i1 to i32
    %c0_i32_0 = arith.constant 0 : i32
    %2 = arith.cmpi ne, %1, %c0_i32_0 : i32
    scf.if %2 {
      %cst_14 = arith.constant 0.000000e+00 : f32
      %20 = vector.broadcast %cst_14 : f32 to vector<1x32xf32>
      %c0_15 = arith.constant 0 : index
      %c0_16 = arith.constant 0 : index
      %21 = vector.load %arg8[%c0_15, %c0_16] : memref<1x32xf32, #tpu.memory_space<vmem>>, vector<1x32xf32>
      tpu.vector_store %arg8[%c0_15, %c0_16], %20 {strides = array<i32>} : memref<1x32xf32, #tpu.memory_space<vmem>>, vector<1x32xf32>,
    } else {
    }
    %c0 = arith.constant 0 : index
    %c0_1 = arith.constant 0 : index
    %c0_2 = arith.constant 0 : index
    %3 = vector.load %arg2[%c0, %c0_1, %c0_2] : memref<1x128x4xf32, #tpu.memory_space<vmem>>, vector<1x128x4xf32>
    %4 = vector.shape_cast %3 : vector<1x128x4xf32> to vector<128x4xf32>
    %c0_3 = arith.constant 0 : index
    %c0_4 = arith.constant 0 : index
    %5 = vector.load %arg3[%c0_3, %c0_4] : memref<4x32xf32, #tpu.memory_space<vmem>>, vector<4x32xf32>
    %cst = arith.constant dense<0.000000e+00> : vector<128x32xf32>
    %6 = tpu.matmul %4, %5, %cst {dimension_numbers = #tpu.dot_dimension_numbers<[1], [0], [0], [1], [0, 0, 1, 1], [], []>} : vector<128x4xf32>, vector<4x32xf32>, vector<128x32xf32> -> vector<128x32xf32>
    %c0_5 = arith.constant 0 : index
    %c0_6 = arith.constant 0 : index
    %7 = vector.load %arg4[%c0_5, %c0_6] : memref<1x32xf32, #tpu.memory_space<vmem>>, vector<1x32xf32>
    %8 = vector.broadcast %7 : vector<1x32xf32> to vector<128x32xf32>
    %9 = arith.addf %6, %8 : vector<128x32xf32>
    %cst_7 = arith.constant 0.000000e+00 : f32
    %10 = vector.broadcast %cst_7 : f32 to vector<128x32xf32>
    %11 = arith.maximumf %9, %10 : vector<128x32xf32>
    %c0_8 = arith.constant 0 : index
    %c0_9 = arith.constant 0 : index
    %12 = vector.load %arg8[%c0_8, %c0_9] : memref<1x32xf32, #tpu.memory_space<vmem>>, vector<1x32xf32>
    %cst_10 = arith.constant dense<0.000000e+00> : vector<32xf32>
    %13 = vector.multi_reduction <add>, %11, %cst_10 [0] : vector<128x32xf32> to vector<32xf32>
    %14 = vector.shape_cast %13 : vector<32xf32> to vector<1x32xf32>
    %15 = arith.addf %12, %14 : vector<1x32xf32>
    %c0_11 = arith.constant 0 : index
    %c0_12 = arith.constant 0 : index
    %16 = vector.load %arg8[%c0_11, %c0_12] : memref<1x32xf32, #tpu.memory_space<vmem>>, vector<1x32xf32>
    tpu.vector_store %arg8[%c0_11, %c0_12], %15 {strides = array<i32>} : memref<1x32xf32, #tpu.memory_space<vmem>>, vector<1x32xf32>,
    %c1_i32 = arith.constant 1 : i32
    %17 = arith.cmpi eq, %arg1, %c1_i32 : i32
    %18 = arith.extui %17 : i1 to i32
    %c0_i32_13 = arith.constant 0 : i32
    %19 = arith.cmpi ne, %18, %c0_i32_13 : i32
    scf.if %19 {
      %c0_14 = arith.constant 0 : index
      %c0_15 = arith.constant 0 : index
      %20 = vector.load %arg8[%c0_14, %c0_15] : memref<1x32xf32, #tpu.memory_space<vmem>>, vector<1x32xf32>
      %c0_16 = arith.constant 0 : index
      %c0_17 = arith.constant 0 : index
      %21 = vector.load %arg5[%c0_16, %c0_17] : memref<32x128xf32, #tpu.memory_space<vmem>>, vector<32x128xf32>
      %cst_18 = arith.constant dense<0.000000e+00> : vector<1x128xf32>
      %22 = tpu.matmul %20, %21, %cst_18 {dimension_numbers = #tpu.dot_dimension_numbers<[1], [0], [0], [1], [0, 0, 1, 1], [], []>} : vector<1x32xf32>, vector<32x128xf32>, vector<1x128xf32> -> vector<1x128xf32>
      %c0_19 = arith.constant 0 : index
      %c0_20 = arith.constant 0 : index
      %23 = vector.load %arg6[%c0_19, %c0_20] : memref<1x128xf32, #tpu.memory_space<vmem>>, vector<1x128xf32>
      %24 = arith.addf %22, %23 : vector<1x128xf32>
      %25 = vector.shape_cast %24 : vector<1x128xf32> to vector<1x1x128xf32>
      %c0_21 = arith.constant 0 : index
      %c0_22 = arith.constant 0 : index
      %c0_23 = arith.constant 0 : index
      %26 = vector.load %arg7[%c0_21, %c0_22, %c0_23] : memref<1x1x128xf32, #tpu.memory_space<vmem>>, vector<1x1x128xf32>
      tpu.vector_store %arg7[%c0_21, %c0_22, %c0_23], %25 {strides = array<i32>} : memref<1x1x128xf32, #tpu.memory_space<vmem>>, vector<1x1x128xf32>,
    } else {
    }
    return
  }
  func.func @transform_0(%arg0: i32, %arg1: i32) -> (i32, i32, i32) {
    %c0_i32 = arith.constant 0 : i32
    %c0_i32_0 = arith.constant 0 : i32
    return %arg0, %arg1, %c0_i32 : i32, i32, i32
  }
  func.func @transform_1(%arg0: i32, %arg1: i32) -> (i32, i32) {
    %c0_i32 = arith.constant 0 : i32
    %c0_i32_0 = arith.constant 0 : i32
    %c0_i32_1 = arith.constant 0 : i32
    return %c0_i32, %c0_i32_0 : i32, i32
  }
  func.func @transform_2(%arg0: i32, %arg1: i32) -> (i32, i32) {
    %c0_i32 = arith.constant 0 : i32
    %c0_i32_0 = arith.constant 0 : i32
    %c0_i32_1 = arith.constant 0 : i32
    return %c0_i32, %c0_i32_0 : i32, i32
  }
  func.func @transform_3(%arg0: i32, %arg1: i32) -> (i32, i32) {
    %c0_i32 = arith.constant 0 : i32
    %c0_i32_0 = arith.constant 0 : i32
    %c0_i32_1 = arith.constant 0 : i32
    return %c0_i32, %c0_i32_0 : i32, i32
  }
  func.func @transform_4(%arg0: i32, %arg1: i32) -> (i32, i32) {
    %c0_i32 = arith.constant 0 : i32
    %c0_i32_0 = arith.constant 0 : i32
    %c0_i32_1 = arith.constant 0 : i32
    return %c0_i32, %c0_i32_0 : i32, i32
  }
  func.func @transform_5(%arg0: i32, %arg1: i32) -> (i32, i32, i32) {
    %c0_i32 = arith.constant 0 : i32
    %c0_i32_0 = arith.constant 0 : i32
    %c0_i32_1 = arith.constant 0 : i32
    return %arg0, %c0_i32, %c0_i32_0 : i32, i32, i32
  }
}

</mosaic_0001>

<llo_original>
// kernel: average_ensemble_forward.1
$region0: #{average_ensemble_forward.1}
  #allocation0 [shape = 'u32[]', space=smem, size = 0x4, offset = 0x4, fixed_abs, tag = 'smem constant byte address 0x4 - core index']
  #allocation1 [shape = 'u32[72,128]{1,0:T(1,128)}', space=vmem, size = 0x9000, scoped, tag = 'internal scratch']
  #allocation2 [shape = 'f32[1,32]{1,0:T(1,128)}', space=vmem, size = 0x200, scoped, tag = 'scratch operand']
  %s0 = inlined_call_operand.vmem [shape: f32[2,256,4], index: 0, kind: input, shape index: {}]
  %s1 = inlined_call_operand.vmem [shape: f32[4,32], index: 1, kind: input, shape index: {}]
  %s2 = inlined_call_operand.vmem [shape: f32[1,32], index: 2, kind: input, shape index: {}]
  %s3 = inlined_call_operand.vmem [shape: f32[32,128], index: 3, kind: input, shape index: {}]
  %s4 = inlined_call_operand.vmem [shape: f32[1,128], index: 4, kind: input, shape index: {}]
  %s5 = inlined_call_operand.hbm [shape: f32[2,1,128], index: 5, kind: output, shape index: {}]
  %s6 = sld [smem:[#allocation0]]
  $region61: #{average_ensemble_forward.1} parent=0
    _
  %s8 = ssub.s32 1, %s6
  %s9 = scalar_select 0, %s8, %s6
  $region1: #{average_ensemble_forward.1} parent=0
    #allocation3 [shape = 'u8[1024]{0}', space=vmem, size = 0x400, scoped, tag = 'output window, operand 0']
    #allocation4 [shape = 's32[2]{0}', space=sflag, size = 0x8, scoped, tag = 'scoped memory for average_ensemble_forward.1']
    %10 = vsyncpa [#allocation4], 0
    %s11 = scalar_lea.sflag [#allocation4], 1
    %12 = vsyncpa %s11, 0
    loop: start=0, step=1, limit=6
    $region2: #{average_ensemble_forward.1} parent=1 // loop_pre_header
      _
    $region3: #{average_ensemble_forward.1} parent=1 // loop_header
      %s14 = sphi 0, %s18
      %p15 = scmp.ge.s32.totalorder %s14, 6
      %s21 = sphi 0, %s33
      %s22 = sphi 0, %s29
      %s23 = sphi 0, %s21
      %s24 = sphi 0, %s22
      %s25 = sphi 0, %s23
      %s26 = sphi 0, %s24
      %s38 = sphi 0, %s40
      %s41 = sphi 0, %s38
      %s42 = sphi 0, %s41
      %s58 = sphi 0, %s42
      %s62 = sphi 0, %s62
      %s64 = sphi 0, %s62
      %s65 = sphi 0, %s64
      %s79 = sphi 0, %s65
      %s83 = sphi 0, %s83
      %s85 = sphi 0, %s83
      %s86 = sphi 0, %s85
      %s100 = sphi 0, %s86
      %s104 = sphi 0, %s104
      %s106 = sphi 0, %s104
      %s107 = sphi 0, %s106
      %s121 = sphi 0, %s107
      %s125 = sphi 0, %s125
      %s127 = sphi 0, %s125
      %s128 = sphi 0, %s127
      %s142 = sphi 0, %s128
      %s148 = sphi 0, %s150
      %s151 = sphi 0, %s148
      %s152 = sphi 0, %s151
      %s168 = sphi 0, %s152
    $region4: #{average_ensemble_forward.1} parent=1 // loop_header_branch
      %17 = sbr.rel (%p15) target = $region8
    $region5: #{average_ensemble_forward.1} parent=1 // loop_body
      %s19 = ssub.s32 %s14, 1
      %s20 = ssub.s32 %s14, 2
      %s27 = sadd.s32 1, %s22
      %p28 = scmp.ge.s32.totalorder %s27, 2
      %s29 = scalar_select %p28, 0, %s27
      %s30 = sadd.s32 1, %s21
      %s31 = scalar_select %p28, %s30, %s21
      %p32 = scmp.ge.s32.totalorder %s31, 2
      %s33 = scalar_select %p32, 0, %s31
      %s34 = ssub.s32 %s21, %s33
      %s35 = ssub.s32 %s22, %s29
      %s36 = sor.u32 %s34, %s35
      %p37 = scmp.eq.s32.totalorder %s36, 0
      %s39 = sadd.s32 %s38, 1
      %s40 = scalar_select %p37, %s38, %s39
      %p43 = pneg %p37
      %p44 = scmp.eq.s32.totalorder %s14, 3
      %p45 = por %p43, %p44
      %p46 = scmp.ne.s32.totalorder %s38, %s41
      %p47 = scmp.eq.s32.totalorder %s14, 0
      %p48 = por %p46, %p47
      %p49 = scmp.ne.s32.totalorder %s38, %s41
      %p50 = scmp.eq.s32.totalorder %s19, 3
      %p51 = por %p49, %p50
      %p52 = scmp.ne.s32.totalorder %s41, %s42
      %p53 = scmp.eq.s32.totalorder %s19, 0
      %p54 = por %p52, %p53
      %p55 = scmp.ne.s32.totalorder %s41, %s42
      %p56 = scmp.eq.s32.totalorder %s20, 3
      %p57 = por %p55, %p56
      %p59 = scmp.ne.s32.totalorder %s42, %s58
      %p60 = scmp.eq.s32.totalorder %s20, 0
      %p61 = por %p59, %p60
      %s63 = sadd.s32 %s62, 1
      %p66 = scmp.eq.s32.totalorder %s14, 3
      %p67 = scmp.ne.s32.totalorder %s62, %s64
      %p68 = scmp.eq.s32.totalorder %s14, 0
      %p69 = por %p67, %p68
      %p70 = scmp.ne.s32.totalorder %s62, %s64
      %p71 = scmp.eq.s32.totalorder %s19, 3
      %p72 = por %p70, %p71
      %p73 = scmp.ne.s32.totalorder %s64, %s65
      %p74 = scmp.eq.s32.totalorder %s19, 0
      %p75 = por %p73, %p74
      %p76 = scmp.ne.s32.totalorder %s64, %s65
      %p77 = scmp.eq.s32.totalorder %s20, 3
      %p78 = por %p76, %p77
      %p80 = scmp.ne.s32.totalorder %s65, %s79
      %p81 = scmp.eq.s32.totalorder %s20, 0
      %p82 = por %p80, %p81
      %s84 = sadd.s32 %s83, 1
      %p87 = scmp.eq.s32.totalorder %s14, 3
      %p88 = scmp.ne.s32.totalorder %s83, %s85
      %p89 = scmp.eq.s32.totalorder %s14, 0
      %p90 = por %p88, %p89
      %p91 = scmp.ne.s32.totalorder %s83, %s85
      %p92 = scmp.eq.s32.totalorder %s19, 3
      %p93 = por %p91, %p92
      %p94 = scmp.ne.s32.totalorder %s85, %s86
      %p95 = scmp.eq.s32.totalorder %s19, 0
      %p96 = por %p94, %p95
      %p97 = scmp.ne.s32.totalorder %s85, %s86
      %p98 = scmp.eq.s32.totalorder %s20, 3
      %p99 = por %p97, %p98
      %p101 = scmp.ne.s32.totalorder %s86, %s100
      %p102 = scmp.eq.s32.totalorder %s20, 0
      %p103 = por %p101, %p102
      %s105 = sadd.s32 %s104, 1
      %p108 = scmp.eq.s32.totalorder %s14, 3
      %p109 = scmp.ne.s32.totalorder %s104, %s106
      %p110 = scmp.eq.s32.totalorder %s14, 0
      %p111 = por %p109, %p110
      %p112 = scmp.ne.s32.totalorder %s104, %s106
      %p113 = scmp.eq.s32.totalorder %s19, 3
      %p114 = por %p112, %p113
      %p115 = scmp.ne.s32.totalorder %s106, %s107
      %p116 = scmp.eq.s32.totalorder %s19, 0
      %p117 = por %p115, %p116
      %p118 = scmp.ne.s32.totalorder %s106, %s107
      %p119 = scmp.eq.s32.totalorder %s20, 3
      %p120 = por %p118, %p119
      %p122 = scmp.ne.s32.totalorder %s107, %s121
      %p123 = scmp.eq.s32.totalorder %s20, 0
      %p124 = por %p122, %p123
      %s126 = sadd.s32 %s125, 1
      %p129 = scmp.eq.s32.totalorder %s14, 3
      %p130 = scmp.ne.s32.totalorder %s125, %s127
      %p131 = scmp.eq.s32.totalorder %s14, 0
      %p132 = por %p130, %p131
      %p133 = scmp.ne.s32.totalorder %s125, %s127
      %p134 = scmp.eq.s32.totalorder %s19, 3
      %p135 = por %p133, %p134
      %p136 = scmp.ne.s32.totalorder %s127, %s128
      %p137 = scmp.eq.s32.totalorder %s19, 0
      %p138 = por %p136, %p137
      %p139 = scmp.ne.s32.totalorder %s127, %s128
      %p140 = scmp.eq.s32.totalorder %s20, 3
      %p141 = por %p139, %p140
      %p143 = scmp.ne.s32.totalorder %s128, %s142
      %p144 = scmp.eq.s32.totalorder %s20, 0
      %p145 = por %p143, %p144
      %s146 = ssub.s32 %s21, %s33
      %p147 = scmp.eq.s32.totalorder %s146, 0
      %s149 = sadd.s32 %s148, 1
      %s150 = scalar_select %p147, %s148, %s149
      %p153 = pneg %p147
      %p154 = scmp.eq.s32.totalorder %s14, 3
      %p155 = por %p153, %p154
      %p156 = scmp.ne.s32.totalorder %s148, %s151
      %p157 = scmp.eq.s32.totalorder %s14, 0
      %p158 = por %p156, %p157
      %p159 = scmp.ne.s32.totalorder %s148, %s151
      %p160 = scmp.eq.s32.totalorder %s19, 3
      %p161 = por %p159, %p160
      %p162 = scmp.ne.s32.totalorder %s151, %s152
      %p163 = scmp.eq.s32.totalorder %s19, 0
      %p164 = por %p162, %p163
      %p165 = scmp.ne.s32.totalorder %s151, %s152
      %p166 = scmp.eq.s32.totalorder %s20, 3
      %p167 = por %p165, %p166
      %p169 = scmp.ne.s32.totalorder %s152, %s168
      %p170 = scmp.eq.s32.totalorder %s20, 0
      %p171 = por %p169, %p170
      %p172 = scmp.le.s32.totalorder 1, %s14
      %p173 = scmp.lt.s32.totalorder %s14, 5
      %p174 = pnand %p172, %p173
      %p175 = pneg %p174
      // Predicated region
      $region9: #{average_ensemble_forward.1} parent=5 // pred_check
        _
      $region10: #{average_ensemble_forward.1} parent=5 // pred_check_branch
        %177 = sbr.rel (%p174) target = $region12
      $region11: #{average_ensemble_forward.1} parent=5 // pred_region
        %s178 = ssub.s32 %s14, 1
        // Predicated region
        $region13: #{average_ensemble_forward.1} parent=11 // pred_check
          %p179 = pneg %p75
        $region14: #{average_ensemble_forward.1} parent=11 // pred_check_branch
          %181 = sbr.rel (%p179) target = $region16
        $region15: #{average_ensemble_forward.1} parent=11 // pred_region
          _
        $region16: #{average_ensemble_forward.1} parent=11 // pred_fallthru
          _
        // Predicated region
        $region17: #{average_ensemble_forward.1} parent=11 // pred_check
          %p182 = pneg %p96
        $region18: #{average_ensemble_forward.1} parent=11 // pred_check_branch
          %184 = sbr.rel (%p182) target = $region20
        $region19: #{average_ensemble_forward.1} parent=11 // pred_region
          _
        $region20: #{average_ensemble_forward.1} parent=11 // pred_fallthru
          _
        // Predicated region
        $region21: #{average_ensemble_forward.1} parent=11 // pred_check
          %p185 = pneg %p117
        $region22: #{average_ensemble_forward.1} parent=11 // pred_check_branch
          %187 = sbr.rel (%p185) target = $region24
        $region23: #{average_ensemble_forward.1} parent=11 // pred_region
          _
        $region24: #{average_ensemble_forward.1} parent=11 // pred_fallthru
          _
        // Predicated region
        $region25: #{average_ensemble_forward.1} parent=11 // pred_check
          %p188 = pneg %p138
        $region26: #{average_ensemble_forward.1} parent=11 // pred_check_branch
          %190 = sbr.rel (%p188) target = $region28
        $region27: #{average_ensemble_forward.1} parent=11 // pred_region
          _
        $region28: #{average_ensemble_forward.1} parent=11 // pred_fallthru
          _
      $region12: #{average_ensemble_forward.1} parent=5 // pred_fallthru
        _
      %p191 = scmp.lt.s32.totalorder %s14, 4
      // Predicated region
      $region29: #{average_ensemble_forward.1} parent=5 // pred_check
        %p192 = pneg %p191
      $region30: #{average_ensemble_forward.1} parent=5 // pred_check_branch
        %194 = sbr.rel (%p192) target = $region32
      $region31: #{average_ensemble_forward.1} parent=5 // pred_region
        // Predicated region
        $region33: #{average_ensemble_forward.1} parent=31 // pred_check
          %p195 = pneg %p48
        $region34: #{average_ensemble_forward.1} parent=31 // pred_check_branch
          %197 = sbr.rel (%p195) target = $region36
        $region35: #{average_ensemble_forward.1} parent=31 // pred_region
          %s198 = smul.u32 16, %s22
          %p199 = scmp.lt.s32.totalorder %s21, 1
          %s200 = scalar_select %p199, %s21, 1
          %p201 = scmp.lt.s32.totalorder %s198, 31
          %s202 = scalar_select %p201, %s198, 31
          %s203 = smul.addr %s200, 32
          %s204 = sadd.s32 %s202, %s203
          %s205 = smul.addr %s204, 8
          %s206 = scalar_lea.vmem %s0, %s205
          %s207 = smul.u32 16, %s22
        $region36: #{average_ensemble_forward.1} parent=31 // pred_fallthru
          _
      $region32: #{average_ensemble_forward.1} parent=5 // pred_fallthru
        _
      %p208 = scmp.le.s32.totalorder 1, %s14
      %p209 = scmp.lt.s32.totalorder %s14, 5
      %p210 = pnand %p208, %p209
      %p211 = pneg %p210
      // Predicated region
      $region37: #{average_ensemble_forward.1} parent=5 // pred_check
        _
      $region38: #{average_ensemble_forward.1} parent=5 // pred_check_branch
        %213 = sbr.rel (%p210) target = $region40
      $region39: #{average_ensemble_forward.1} parent=5 // pred_region
        %s214 = ssub.s32 %s14, 1
        %s215 = smul.u32 16, %s24
        %p216 = scmp.lt.s32.totalorder %s23, 1
        %s217 = scalar_select %p216, %s23, 1
        %p218 = scmp.lt.s32.totalorder %s215, 31
        %s219 = scalar_select %p218, %s215, 31
        %s220 = smul.addr %s217, 32
        %s221 = sadd.s32 %s219, %s220
        %s222 = smul.addr %s221, 8
        %s223 = scalar_lea.vmem %s0, %s222
        %p224 = pneg %p54
        %p225 = pneg %p51
        %p226 = pneg %p75
        %p227 = pneg %p72
        %p228 = pneg %p96
        %p229 = pneg %p93
        %p230 = pneg %p117
        %p231 = pneg %p114
        %p232 = pneg %p138
        %p233 = pneg %p135
        %p234 = pneg %p164
        %p235 = pneg %p161
        %s236 = sand.u32 %s151, 1
        %s237 = scalar_lea.sflag [#allocation4], %s236
        %s238 = sand.u32 %s151, 1
        %s239 = scalar_lea.vmem [#allocation3], %s238
        %s240 = smul.u32 16, %s24
        %p241 = scmp.lt.s32.totalorder %s23, 1
        %s242 = scalar_select %p241, %s23, 1
        %p243 = scmp.lt.s32.totalorder %s240, 31
        %s244 = scalar_select %p243, %s240, 31
        %s245 = smul.addr %s242, 32
        %s246 = sadd.s32 %s244, %s245
        %s247 = smul.addr %s246, 8
        %s248 = scalar_lea.vmem %s0, %s247
        %s249 = smul.u32 16, %s24
        %p250 = scmp.eq.s32.totalorder %s24, 0
        // Predicated region
        $region41: #{average_ensemble_forward.1} parent=39 // pred_check
          %p251 = pneg %p250
        $region42: #{average_ensemble_forward.1} parent=39 // pred_check_branch
          %253 = sbr.rel (%p251) target = $region44
        $region43: #{average_ensemble_forward.1} parent=39 // pred_region
          %vm254 = vcmask 253952
          %255 = vst.msk [vmem:[#allocation2] sm:$0x1] %vm254, 0.0
        $region44: #{average_ensemble_forward.1} parent=39 // pred_fallthru
          _
        %v256 = vld [vmem:[%s248] sm:$0xff]
        %v257 = vld [vmem:[%s248 + $0x8] sm:$0xff]
        %v258 = vld [vmem:[%s248 + $0x10] sm:$0xff]
        %v259 = vld [vmem:[%s248 + $0x18] sm:$0xff]
        %v260 = vld [vmem:[%s248 + $0x20] sm:$0xff]
        %v261 = vld [vmem:[%s248 + $0x28] sm:$0xff]
        %v262 = vld [vmem:[%s248 + $0x30] sm:$0xff]
        %v263 = vld [vmem:[%s248 + $0x38] sm:$0xff]
        %v264 = vld [vmem:[%s248 + $0x40] sm:$0xff]
        %v265 = vld [vmem:[%s248 + $0x48] sm:$0xff]
        %v266 = vld [vmem:[%s248 + $0x50] sm:$0xff]
        %v267 = vld [vmem:[%s248 + $0x58] sm:$0xff]
        %v268 = vld [vmem:[%s248 + $0x60] sm:$0xff]
        %v269 = vld [vmem:[%s248 + $0x68] sm:$0xff]
        %v270 = vld [vmem:[%s248 + $0x70] sm:$0xff]
        %v271 = vld [vmem:[%s248 + $0x78] sm:$0xff]
        %v272 = vld [vmem:[%s1] sm:$0xf]
        %v273 = vld [vmem:[%s2] sm:$0x1]
        %v275 = vperm.slane %v273, 0
        %vm277 = vcmask 31744
        %v279 = vsel %vm277, %v256, 0
        %v282 = vsel %vm277, %v257, 0
        %v285 = vsel %vm277, %v258, 0
        %v288 = vsel %vm277, %v259, 0
        %v291 = vsel %vm277, %v260, 0
        %v294 = vsel %vm277, %v261, 0
        %v297 = vsel %vm277, %v262, 0
        %v300 = vsel %vm277, %v263, 0
        %v303 = vsel %vm277, %v264, 0
        %v306 = vsel %vm277, %v265, 0
        %v309 = vsel %vm277, %v266, 0
        %v312 = vsel %vm277, %v267, 0
        %v315 = vsel %vm277, %v268, 0
        %v318 = vsel %vm277, %v269, 0
        %v321 = vsel %vm277, %v270, 0
        %v324 = vsel %vm277, %v271, 0
        %vm326 = vcmask 1043456
        %v328 = vsel %vm326, %v272, 0
        %330 = vmatpush.msra.mxu0 0.0
        %331 = vmatpush.msra.mxu0 0.0
        %332 = vmatpush.msra.mxu0 0.0
        %333 = vmatpush.msra.mxu0 0.0
        %334 = vmatpush.msra.mxu0 0.0
        %335 = vmatpush.msra.mxu0 0.0
        %336 = vmatpush.msra.mxu0 0.0
        %337 = vmatpush.msra.mxu0 0.0
        %338 = vmatpush.msra.mxu0 0.0
        %339 = vmatpush.msra.mxu0 0.0
        %340 = vmatpush.msra.mxu0 0.0
        %341 = vmatpush.msra.mxu0 0.0
        %342 = vmatpush.msra.mxu0 0.0
        %343 = vmatpush.msra.mxu0 0.0
        %344 = vmatpush.msra.mxu0 0.0
        %345 = vmatpush.msra.mxu0 %v328
        %346 = vmatmul.f32.gmra.mxu0 %v279
        %v347 = vpop.f32.mrf.mxu0
        %v348 = vadd.f32 %v275, %v347
        %349 = vmatmul.f32.gmra.mxu0 %v282
        %v350 = vpop.f32.mrf.mxu0
        %v351 = vadd.f32 %v275, %v350
        %352 = vmatmul.f32.gmra.mxu0 %v285
        %v353 = vpop.f32.mrf.mxu0
        %v354 = vadd.f32 %v275, %v353
        %355 = vmatmul.f32.gmra.mxu0 %v288
        %v356 = vpop.f32.mrf.mxu0
        %v357 = vadd.f32 %v275, %v356
        %358 = vmatmul.f32.gmra.mxu0 %v291
        %v359 = vpop.f32.mrf.mxu0
        %v360 = vadd.f32 %v275, %v359
        %361 = vmatmul.f32.gmra.mxu0 %v294
        %v362 = vpop.f32.mrf.mxu0
        %v363 = vadd.f32 %v275, %v362
        %364 = vmatmul.f32.gmra.mxu0 %v297
        %v365 = vpop.f32.mrf.mxu0
        %v366 = vadd.f32 %v275, %v365
        %367 = vmatmul.f32.gmra.mxu0 %v300
        %v368 = vpop.f32.mrf.mxu0
        %v369 = vadd.f32 %v275, %v368
        %370 = vmatmul.f32.gmra.mxu0 %v303
        %v371 = vpop.f32.mrf.mxu0
        %v372 = vadd.f32 %v275, %v371
        %373 = vmatmul.f32.gmra.mxu0 %v306
        %v374 = vpop.f32.mrf.mxu0
        %v375 = vadd.f32 %v275, %v374
        %376 = vmatmul.f32.gmra.mxu0 %v309
        %v377 = vpop.f32.mrf.mxu0
        %v378 = vadd.f32 %v275, %v377
        %379 = vmatmul.f32.gmra.mxu0 %v312
        %v380 = vpop.f32.mrf.mxu0
        %v381 = vadd.f32 %v275, %v380
        %382 = vmatmul.f32.gmra.mxu0 %v315
        %v383 = vpop.f32.mrf.mxu0
        %v384 = vadd.f32 %v275, %v383
        %385 = vmatmul.f32.gmra.mxu0 %v318
        %v386 = vpop.f32.mrf.mxu0
        %v387 = vadd.f32 %v275, %v386
        %388 = vmatmul.f32.gmra.mxu0 %v321
        %v389 = vpop.f32.mrf.mxu0
        %v390 = vadd.f32 %v275, %v389
        %391 = vmatmul.f32.gmra.mxu0 %v324
        %v392 = vpop.f32.mrf.mxu0
        %v393 = vadd.f32 %v275, %v392
        %394 = vdwg.mxu0
        %v395 = vmax.f32 %v348, 0.0
        %v396 = vmax.f32 %v351, 0.0
        %v397 = vmax.f32 %v354, 0.0
        %v398 = vmax.f32 %v357, 0.0
        %v399 = vmax.f32 %v360, 0.0
        %v400 = vmax.f32 %v363, 0.0
        %v401 = vmax.f32 %v366, 0.0
        %v402 = vmax.f32 %v369, 0.0
        %v403 = vmax.f32 %v372, 0.0
        %v404 = vmax.f32 %v375, 0.0
        %v405 = vmax.f32 %v378, 0.0
        %v406 = vmax.f32 %v381, 0.0
        %v407 = vmax.f32 %v384, 0.0
        %v408 = vmax.f32 %v387, 0.0
        %v409 = vmax.f32 %v390, 0.0
        %v410 = vmax.f32 %v393, 0.0
        %v411 = vld [vmem:[#allocation2] sm:$0x1]
        %vm412 = vcmask 261120
        %v413 = vsel %vm412, %v395, 0.0
        %v414 = vsel %vm412, %v396, 0.0
        %v415 = vadd.f32 %v413, %v414
        %v416 = vsel %vm412, %v397, 0.0
        %v417 = vadd.f32 %v415, %v416
        %v418 = vsel %vm412, %v398, 0.0
        %v419 = vadd.f32 %v417, %v418
        %v420 = vsel %vm412, %v399, 0.0
        %v421 = vadd.f32 %v419, %v420
        %v422 = vsel %vm412, %v400, 0.0
        %v423 = vadd.f32 %v421, %v422
        %v424 = vsel %vm412, %v401, 0.0
        %v425 = vadd.f32 %v423, %v424
        %v426 = vsel %vm412, %v402, 0.0
        %v427 = vadd.f32 %v425, %v426
        %v428 = vsel %vm412, %v403, 0.0
        %v429 = vadd.f32 %v427, %v428
        %v430 = vsel %vm412, %v404, 0.0
        %v431 = vadd.f32 %v429, %v430
        %v432 = vsel %vm412, %v405, 0.0
        %v433 = vadd.f32 %v431, %v432
        %v434 = vsel %vm412, %v406, 0.0
        %v435 = vadd.f32 %v433, %v434
        %v436 = vsel %vm412, %v407, 0.0
        %v437 = vadd.f32 %v435, %v436
        %v438 = vsel %vm412, %v408, 0.0
        %v439 = vadd.f32 %v437, %v438
        %v440 = vsel %vm412, %v409, 0.0
        %v441 = vadd.f32 %v439, %v440
        %v442 = vsel %vm412, %v410, 0.0
        %v443 = vadd.f32 %v441, %v442
        %v444 = vrot.slane %v443, 4
        %v445 = vadd.f32 %v443, %v444
        %v446 = vrot.slane %v445, 2
        %v447 = vadd.f32 %v445, %v446
        %v448 = vrot.slane %v447, 1
        %v449 = vadd.f32 %v447, %v448
        %v450 = vadd.f32 %v411, %v449
        %vm451 = vcmask 253952
        %452 = vst.msk [vmem:[#allocation2] sm:$0x1] %vm451, %v450
        %p453 = scmp.eq.s32.totalorder %s24, 1
        // Predicated region
        $region45: #{average_ensemble_forward.1} parent=39 // pred_check
          %p454 = pneg %p453
        $region46: #{average_ensemble_forward.1} parent=39 // pred_check_branch
          %456 = sbr.rel (%p454) target = $region48
        $region47: #{average_ensemble_forward.1} parent=39 // pred_region
          %v457 = vld [vmem:[#allocation2] sm:$0x1]
          %v458 = vld [vmem:[%s3] sm:$0xff]
          %v459 = vld [vmem:[%s3 + $0x8] sm:$0xff]
          %v460 = vld [vmem:[%s3 + $0x10] sm:$0xff]
          %v461 = vld [vmem:[%s3 + $0x18] sm:$0xff]
          %v462 = vld [vmem:[%s4] sm:$0x1]
          %v464 = vsel %vm412, %v457, 0
          %466 = vmatpush.msra.mxu0 0.0
          %467 = vmatpush.msra.mxu0 0.0
          %468 = vmatpush.msra.mxu0 0.0
          %469 = vmatpush.msra.mxu0 0.0
          %470 = vmatpush.msra.mxu0 0.0
          %471 = vmatpush.msra.mxu0 0.0
          %472 = vmatpush.msra.mxu0 0.0
          %473 = vmatpush.msra.mxu0 0.0
          %474 = vmatpush.msra.mxu0 0.0
          %475 = vmatpush.msra.mxu0 0.0
          %476 = vmatpush.msra.mxu0 0.0
          %477 = vmatpush.msra.mxu0 0.0
          %478 = vmatpush.msra.mxu0 %v461
          %479 = vmatpush.msra.mxu0 %v460
          %480 = vmatpush.msra.mxu0 %v459
          %481 = vmatpush.msra.mxu0 %v458
          %482 = vmatmul.f32.gmra.mxu0 %v464
          %v483 = vpop.f32.mrf.mxu0
          %v484 = vadd.f32 %v462, %v483
          %485 = vdwg.mxu0
          %486 = vst [vmem:[%s239] sm:$0x1] %v484
        $region48: #{average_ensemble_forward.1} parent=39 // pred_fallthru
          _
        %s487 = sand.u32 %s151, 1
        %s488 = scalar_lea.sflag [#allocation4], %s487
        %s489 = sand.u32 %s151, 1
        %s490 = scalar_lea.vmem [#allocation3], %s489
        // Predicated region
        $region49: #{average_ensemble_forward.1} parent=39 // pred_check
          %p491 = pneg %p161
        $region50: #{average_ensemble_forward.1} parent=39 // pred_check_branch
          %493 = sbr.rel (%p491) target = $region52
        $region51: #{average_ensemble_forward.1} parent=39 // pred_region
          %495 = vsyncadd %s488, 0
          %s496 = scalar_lea.hbm %s5, %s23
          %s498 = sshll.u32 %s490, 4
          %s499 = int_to_ptr.vmem [resolvable:$true] %s498
          %s500 = sshll.u32 %s496, 4
          %s501 = int_to_ptr.hbm [resolvable:$true] %s500
          %503 = dma.vmem_to_hbm [thread:$0]  %s499, 16, %s501, %s488
        $region52: #{average_ensemble_forward.1} parent=39 // pred_fallthru
          _
      $region40: #{average_ensemble_forward.1} parent=5 // pred_fallthru
        _
      %p504 = scmp.le.s32.totalorder 2, %s14
      // Predicated region
      $region53: #{average_ensemble_forward.1} parent=5 // pred_check
        %p505 = pneg %p504
      $region54: #{average_ensemble_forward.1} parent=5 // pred_check_branch
        %507 = sbr.rel (%p505) target = $region56
      $region55: #{average_ensemble_forward.1} parent=5 // pred_region
        %s508 = ssub.s32 %s14, 2
        // Predicated region
        $region57: #{average_ensemble_forward.1} parent=55 // pred_check
          %p509 = pneg %p167
        $region58: #{average_ensemble_forward.1} parent=55 // pred_check_branch
          %511 = sbr.rel (%p509) target = $region60
        $region59: #{average_ensemble_forward.1} parent=55 // pred_region
          %s512 = sand.u32 %s152, 1
          %s513 = scalar_lea.sflag [#allocation4], %s512
          %s514 = sand.u32 %s152, 1
          %s515 = scalar_lea.vmem [#allocation3], %s514
          %517 = dma.done %s513, 16
        $region60: #{average_ensemble_forward.1} parent=55 // pred_fallthru
          _
      $region56: #{average_ensemble_forward.1} parent=5 // pred_fallthru
        _
    $region6: #{average_ensemble_forward.1} parent=1 // loop_footer
      %s18 = sadd.s32 1, %s14
    $region7: #{average_ensemble_forward.1} parent=1 // loop_footer_branch
      %13 = sbr.rel target = $region3
    $region8: #{average_ensemble_forward.1} parent=1 // loop_exit
      _
    %518 = vsyncpa [#allocation4], 1
    %s519 = scalar_lea.sflag [#allocation4], 1
    %520 = vsyncpa %s519, 1

</llo_original>
